<compile_context>
chip_gen: v6e
topology: v6e:2x2x1
jax: 0.10.0
libtpu: 0.0.40
codegen_flags: <defaults>
</compile_context>

<pallas_src>
import jax
import jax.numpy as jnp
from jax import lax
from jax.experimental import pallas as pl
from jax.experimental.pallas import tpu as pltpu


def _round_up(x, m):
    return ((x + m - 1) // m) * m


def _nau_alu_kernel(bias_ref, w_ref, x_ref, out_ref):
    """bias_ref: SMEM (1,); w_ref: VMEM (1, S); x_ref: VMEM (TB, S) natural
    layout; out_ref: VMEM (1, TB) lane-dense."""
    # W-only preprocessing: clamp of S elements per grid step (negligible).
    w = jnp.clip(w_ref[...], -1.0, 1.0)                                # (1, S)
    # Contract on the shared S axis (rhs-transposed matmul): (1,S).(TB,S)^T.
    y = lax.dot_general(
        w, x_ref[...],
        dimension_numbers=(((1,), (1,)), ((), ())),
        preferred_element_type=jnp.float32,
    )                                                                   # (1, TB)
    out_ref[...] = y + bias_ref[0]


def _pick_batch_tile(B, S, target_x_buf_bytes=8 * 1024 * 1024):
    """Largest batch tile whose lane-padded (TB, S) f32 buffer is ~8 MiB."""
    s_lanes = _round_up(max(S, 1), 128)          # (TB, S) pads S to 128 lanes
    if B <= 1024:
        return B                                 # single full-extent block
    tb = target_x_buf_bytes // (s_lanes * 4)
    tb = min(tb, B)
    tb = max(8, (tb // 8) * 8)                   # sublane multiple
    return tb


def _vmem_footprint_bytes(tb, S):
    """Double-buffered VMEM use: X tile + W row + out tile (all lane-padded)."""
    s_lanes = _round_up(max(S, 1), 128)
    x_buf = tb * s_lanes * 4
    w_buf = 8 * s_lanes * 4
    out_buf = 8 * _round_up(tb, 128) * 4
    return 2 * (x_buf + w_buf + out_buf)


def nau_alu(x, W, bias):
    """x: (B, S) f32, W: (S, 1) f32, bias: (1,) f32.  Returns (B, 1) f32."""
    B, S = x.shape
    tb = _pick_batch_tile(B, S)
    grid = (pl.cdiv(B, tb),)

    total_vmem = _vmem_footprint_bytes(tb, S)
    # TODO(synk): add an S-tiling accumulator path for very large storage dims
    # (currently the whole W row and the S extent of each X tile are resident).
    assert total_vmem <= (48 << 20), (
        f"storage={S} too large for a single resident tile "
        f"({total_vmem / 2**20:.1f} MiB); S-tiling not implemented")
    vmem_limit = max(16 << 20, min(int(total_vmem * 1.5) + (1 << 20), 48 << 20))

    x_f32 = x.astype(jnp.float32)                       # natural (B, S) layout
    w_row = W.astype(jnp.float32).reshape(1, S)         # (1, S)
    bias_arr = jnp.asarray(bias, dtype=jnp.float32).reshape(1)

    y = pl.pallas_call(
        _nau_alu_kernel,
        out_shape=jax.ShapeDtypeStruct((1, B), jnp.float32),
        grid=grid,
        in_specs=[
            pl.BlockSpec(memory_space=pltpu.MemorySpace.SMEM),   # bias scalar
            pl.BlockSpec((1, S), lambda i: (0, 0)),              # W row (resident)
            pl.BlockSpec((tb, S), lambda i: (i, 0)),             # X tile (streamed)
        ],
        out_specs=pl.BlockSpec((1, tb), lambda i: (0, i)),       # lane-dense out
        compiler_params=pltpu.CompilerParams(
            dimension_semantics=("parallel",),                   # v7x 2-TC sharding
            vmem_limit_bytes=vmem_limit,
        ),
    )(bias_arr, w_row, x_f32)

    # Output is only B*4 bytes; this transpose is trivial next to the X stream.
    return jnp.transpose(y)                              # (B, 1)


def _reference(x, W, bias):
    """Pure-JAX mirror of the PyTorch forward."""
    w = jnp.clip(W, -1.0, 1.0)
    return bias + x @ w


def _xavier_normal(key, shape):
    fan_in, fan_out = shape[0], shape[1]
    std = (2.0 / (fan_in + fan_out)) ** 0.5
    return std * jax.random.normal(key, shape, dtype=jnp.float32)


if __name__ == "__main__":
    B, STORAGE, REDUNDANCY = 8, 32, 4   # redundancy is unused by NAU_ALU.forward
    key = jax.random.PRNGKey(0)
    k_w, k_x = jax.random.split(key, 2)

    W = _xavier_normal(k_w, (STORAGE, 1))                 # xavier_normal_ init
    bias = jnp.array([0.1], dtype=jnp.float32)            # exercise the bias path
    x = jax.random.normal(k_x, (B, STORAGE), dtype=jnp.float32)

    out = nau_alu(x, W, bias)
    out = jax.block_until_ready(out)

    ref = _reference(x, W, bias)
    assert out.shape == (B, 1)
    assert jnp.allclose(out, ref, atol=1e-5, rtol=1e-5)

    print("KERNEL_OK")
</pallas_src>

<mosaic_0001>
module attributes {stable_mosaic.version = 11 : i64} {
  func.func @_nau_alu_kernel(%arg0: i32, %arg1: memref<1xf32, #tpu.memory_space<smem>>, %arg2: memref<1x32xf32, #tpu.memory_space<vmem>>, %arg3: memref<8x32xf32, #tpu.memory_space<vmem>>, %arg4: memref<1x8xf32, #tpu.memory_space<vmem>>) attributes {dimension_semantics = [#tpu.dimension_semantics<parallel>], iteration_bounds = array<i64: 1>, scalar_prefetch = 0 : i64, scratch_operands = 0 : i64, tpu.core_type = #tpu.core_type<tc>, window_params = [{transform_indices = @transform_0, window_bounds = array<i64: 1>}, {pipeline_mode = #tpu.pipeline_mode<synchronous>, transform_indices = @transform_1, window_bounds = array<i64: 1, 32>}, {transform_indices = @transform_2, window_bounds = array<i64: 8, 32>}, {transform_indices = @transform_3, window_bounds = array<i64: 1, 8>}]} {
    %c0 = arith.constant 0 : index
    %c0_0 = arith.constant 0 : index
    %0 = vector.load %arg2[%c0, %c0_0] : memref<1x32xf32, #tpu.memory_space<vmem>>, vector<1x32xf32>
    %cst = arith.constant -1.000000e+00 : f32
    %cst_1 = arith.constant 1.000000e+00 : f32
    %1 = vector.broadcast %cst : f32 to vector<1x32xf32>
    %2 = arith.maximumf %1, %0 : vector<1x32xf32>
    %3 = vector.broadcast %cst_1 : f32 to vector<1x32xf32>
    %4 = arith.minimumf %3, %2 : vector<1x32xf32>
    %c0_2 = arith.constant 0 : index
    %c0_3 = arith.constant 0 : index
    %5 = vector.load %arg3[%c0_2, %c0_3] : memref<8x32xf32, #tpu.memory_space<vmem>>, vector<8x32xf32>
    %cst_4 = arith.constant dense<0.000000e+00> : vector<1x8xf32>
    %6 = tpu.matmul %4, %5, %cst_4 {dimension_numbers = #tpu.dot_dimension_numbers<[1], [1], [0], [0], [0, 0, 1, 0], [], []>} : vector<1x32xf32>, vector<8x32xf32>, vector<1x8xf32> -> vector<1x8xf32>
    %c0_5 = arith.constant 0 : index
    %7 = memref.load %arg1[%c0_5] : memref<1xf32, #tpu.memory_space<smem>>
    %8 = vector.broadcast %7 : f32 to vector<1x8xf32>
    %9 = arith.addf %6, %8 : vector<1x8xf32>
    %c0_6 = arith.constant 0 : index
    %c0_7 = arith.constant 0 : index
    %10 = vector.load %arg4[%c0_6, %c0_7] : memref<1x8xf32, #tpu.memory_space<vmem>>, vector<1x8xf32>
    tpu.vector_store %arg4[%c0_6, %c0_7], %9 {strides = array<i32>} : memref<1x8xf32, #tpu.memory_space<vmem>>, vector<1x8xf32>,
    return
  }
  func.func @transform_0(%arg0: i32) -> i32 {
    %c0_i32 = arith.constant 0 : i32
    %c0_i32_0 = arith.constant 0 : i32
    return %c0_i32 : i32
  }
  func.func @transform_1(%arg0: i32) -> (i32, i32) {
    %c0_i32 = arith.constant 0 : i32
    %c0_i32_0 = arith.constant 0 : i32
    %c0_i32_1 = arith.constant 0 : i32
    return %c0_i32, %c0_i32_0 : i32, i32
  }
  func.func @transform_2(%arg0: i32) -> (i32, i32) {
    %c0_i32 = arith.constant 0 : i32
    %c0_i32_0 = arith.constant 0 : i32
    return %arg0, %c0_i32 : i32, i32
  }
  func.func @transform_3(%arg0: i32) -> (i32, i32) {
    %c0_i32 = arith.constant 0 : i32
    %c0_i32_0 = arith.constant 0 : i32
    return %c0_i32, %arg0 : i32, i32
  }
}

</mosaic_0001>

<llo_original>
// kernel: tpu_custom_call.1
$region0: #{tpu_custom_call.1}
  #allocation0 [shape = 'u32[]', space=smem, size = 0x4, offset = 0x4, fixed_abs, tag = 'smem constant byte address 0x4 - core index']
  #allocation1 [shape = 'u32[144,128]{1,0:T(1,128)}', space=vmem, size = 0x12000, scoped, tag = 'internal scratch']
  #allocation2 [shape = 'f32[1]{0:T(128)S(6)}', space=smem, size = 0x200, scoped, tag = 'scoped memory for tpu_custom_call.1']
  %s0 = inlined_call_operand.<no memory space> [shape: f32[1], index: 0, kind: input, shape index: {}]
  %s1 = inlined_call_operand.vmem [shape: f32[1,32], index: 1, kind: input, shape index: {}]
  %s2 = inlined_call_operand.hbm [shape: f32[8,32], index: 2, kind: input, shape index: {}]
  %s3 = inlined_call_operand.hbm [shape: f32[1,8], index: 3, kind: output, shape index: {}]
  %s4 = sld [smem:[#allocation0]]
  $region26: #{tpu_custom_call.1} parent=0
    _
  %s6 = ssub.s32 1, %s4
  %s7 = scalar_select 0, %s6, %s4
  %8 = sst [smem:[#allocation2]] %s0
  $region1: #{tpu_custom_call.1} parent=0
    #allocation3 [shape = 'u8[4096]{0}', space=vmem, size = 0x1000, scoped, tag = 'input window, operand 2, single buffered']
    #allocation4 [shape = 's32[1]{0}', space=sflag, size = 0x4, scoped, tag = 'scoped memory for tpu_custom_call.1']
    #allocation5 [shape = 's32[1]{0}', space=sflag, size = 0x4, scoped, tag = 'scoped memory for tpu_custom_call.1']
    #allocation6 [shape = 'u8[512]{0}', space=vmem, size = 0x400, scoped, tag = 'output window, operand 0, single buffered']
    %9 = vsyncpa [#allocation4], 0
    %10 = vsyncpa [#allocation5], 0
    // Predicated region
    $region2: #{tpu_custom_call.1} parent=1 // pred_check
      _
    $region3: #{tpu_custom_call.1} parent=1 // pred_check_branch
      %12 = sbr.rel (0) target = $region5
    $region4: #{tpu_custom_call.1} parent=1 // pred_region
      _
    $region5: #{tpu_custom_call.1} parent=1 // pred_fallthru
      _
    // Predicated region
    $region6: #{tpu_custom_call.1} parent=1 // pred_check
      _
    $region7: #{tpu_custom_call.1} parent=1 // pred_check_branch
      %14 = sbr.rel (0) target = $region9
    $region8: #{tpu_custom_call.1} parent=1 // pred_region
      _
    $region9: #{tpu_custom_call.1} parent=1 // pred_fallthru
      _
    // Predicated region
    $region10: #{tpu_custom_call.1} parent=1 // pred_check
      _
    $region11: #{tpu_custom_call.1} parent=1 // pred_check_branch
      %16 = sbr.rel (0) target = $region13
    $region12: #{tpu_custom_call.1} parent=1 // pred_region
      %s18 = ssub.s32 128, 128
      %19 = vsyncadd [#allocation4], %s18
      %s21 = sshll.u32 [#allocation3], 4
      %s22 = int_to_ptr.vmem [resolvable:$true] %s21
      %24 = dma.hbm_to_vmem [thread:$0]  %s2, 128, %s22, [#allocation4]
    $region13: #{tpu_custom_call.1} parent=1 // pred_fallthru
      _
    // Predicated region
    $region14: #{tpu_custom_call.1} parent=1 // pred_check
      _
    $region15: #{tpu_custom_call.1} parent=1 // pred_check_branch
      %26 = sbr.rel (0) target = $region17
    $region16: #{tpu_custom_call.1} parent=1 // pred_region
      %27 = dma.done [#allocation4], 128
    $region17: #{tpu_custom_call.1} parent=1 // pred_fallthru
      _
    %v28 = vld [vmem:[%s1] sm:$0x1]
    %v29 = vmax.f32 %v28, -1.0
    %v30 = vmin.f32 %v29, 1.0
    %v31 = vld [vmem:[#allocation3] sm:$0xff]
    %s32 = sld [smem:[#allocation2]]
    %v33 = vstv %s32
    %vm34 = vcmask 261120
    %v36 = vsel %vm34, %v30, 0
    %v39 = vsel %vm34, %v31, 0
    %41 = vmatprep.subr.mxu0 0.0
    %42 = vmatpush1.xpose.msra.mxu0 0.0
    %43 = vmatprep.subr.mxu0 0.0
    %44 = vmatpush1.xpose.msra.mxu0 0.0
    %45 = vmatprep.subr.mxu0 0.0
    %46 = vmatpush1.xpose.msra.mxu0 0.0
    %47 = vmatprep.subr.mxu0 0.0
    %48 = vmatpush1.xpose.msra.mxu0 0.0
    %49 = vmatprep.subr.mxu0 0.0
    %50 = vmatpush1.xpose.msra.mxu0 0.0
    %51 = vmatprep.subr.mxu0 0.0
    %52 = vmatpush1.xpose.msra.mxu0 0.0
    %53 = vmatprep.subr.mxu0 0.0
    %54 = vmatpush1.xpose.msra.mxu0 0.0
    %55 = vmatprep.subr.mxu0 0.0
    %56 = vmatpush1.xpose.msra.mxu0 0.0
    %57 = vmatprep.subr.mxu0 0.0
    %58 = vmatpush1.xpose.msra.mxu0 0.0
    %59 = vmatprep.subr.mxu0 0.0
    %60 = vmatpush1.xpose.msra.mxu0 0.0
    %61 = vmatprep.subr.mxu0 0.0
    %62 = vmatpush1.xpose.msra.mxu0 0.0
    %63 = vmatprep.subr.mxu0 0.0
    %64 = vmatpush1.xpose.msra.mxu0 0.0
    %65 = vmatprep.subr.mxu0 0.0
    %66 = vmatpush1.xpose.msra.mxu0 0.0
    %67 = vmatprep.subr.mxu0 0.0
    %68 = vmatpush1.xpose.msra.mxu0 0.0
    %69 = vmatprep.subr.mxu0 0.0
    %70 = vmatpush1.xpose.msra.mxu0 0.0
    %71 = vmatprep.subr.mxu0 0.0
    %72 = vmatpush1.xpose.msra.mxu0 %v39
    %73 = vmatprep.subr.mxu0 0.0
    %74 = vmatpush2.xpose.msra.mxu0 0.0
    %75 = vmatprep.subr.mxu0 0.0
    %76 = vmatpush2.xpose.msra.mxu0 0.0
    %77 = vmatprep.subr.mxu0 0.0
    %78 = vmatpush2.xpose.msra.mxu0 0.0
    %79 = vmatprep.subr.mxu0 0.0
    %80 = vmatpush2.xpose.msra.mxu0 0.0
    %81 = vmatprep.subr.mxu0 0.0
    %82 = vmatpush2.xpose.msra.mxu0 0.0
    %83 = vmatprep.subr.mxu0 0.0
    %84 = vmatpush2.xpose.msra.mxu0 0.0
    %85 = vmatprep.subr.mxu0 0.0
    %86 = vmatpush2.xpose.msra.mxu0 0.0
    %87 = vmatprep.subr.mxu0 0.0
    %88 = vmatpush2.xpose.msra.mxu0 0.0
    %89 = vmatprep.subr.mxu0 0.0
    %90 = vmatpush2.xpose.msra.mxu0 0.0
    %91 = vmatprep.subr.mxu0 0.0
    %92 = vmatpush2.xpose.msra.mxu0 0.0
    %93 = vmatprep.subr.mxu0 0.0
    %94 = vmatpush2.xpose.msra.mxu0 0.0
    %95 = vmatprep.subr.mxu0 0.0
    %96 = vmatpush2.xpose.msra.mxu0 0.0
    %97 = vmatprep.subr.mxu0 0.0
    %98 = vmatpush2.xpose.msra.mxu0 0.0
    %99 = vmatprep.subr.mxu0 0.0
    %100 = vmatpush2.xpose.msra.mxu0 0.0
    %101 = vmatprep.subr.mxu0 0.0
    %102 = vmatpush2.xpose.msra.mxu0 0.0
    %103 = vmatprep.subr.mxu0 0.0
    %104 = vmatpush2.xpose.msra.mxu0 0.0
    %105 = vmatprep.mubr.f32.mxu0 0.0
    %106 = vmatmul.mubr.f32.gmra.mxu0 %v36
    %v107 = vpop.f32.mrf.mxu0
    %v108 = vadd.f32 %v33, %v107
    %v109 = vpop.f32.mrf.mxu0
    %110 = vdwg.mxu0
    %vm111 = vcmask 57344
    %112 = vst.msk [vmem:[#allocation6] sm:$0x1] %vm111, %v108
    // Predicated region
    $region18: #{tpu_custom_call.1} parent=1 // pred_check
      _
    $region19: #{tpu_custom_call.1} parent=1 // pred_check_branch
      %114 = sbr.rel (0) target = $region21
    $region20: #{tpu_custom_call.1} parent=1 // pred_region
      %s116 = ssub.s32 16, 16
      %117 = vsyncadd [#allocation5], %s116
      %s119 = sshll.u32 [#allocation6], 4
      %s120 = int_to_ptr.vmem [resolvable:$true] %s119
      %122 = dma.vmem_to_hbm [thread:$0]  %s120, 16, %s3, [#allocation5]
    $region21: #{tpu_custom_call.1} parent=1 // pred_fallthru
      _
    // Predicated region
    $region22: #{tpu_custom_call.1} parent=1 // pred_check
      _
    $region23: #{tpu_custom_call.1} parent=1 // pred_check_branch
      %124 = sbr.rel (0) target = $region25
    $region24: #{tpu_custom_call.1} parent=1 // pred_region
      %125 = dma.done [#allocation5], 16
    $region25: #{tpu_custom_call.1} parent=1 // pred_fallthru
      _
    %126 = vsyncpa [#allocation4], 1
    %127 = vsyncpa [#allocation5], 1

</llo_original>
